<compile_context>
chip_gen: v5e
topology: v5e:2x2
jax: 0.10.0
libtpu: 0.0.40
codegen_flags: <defaults>
</compile_context>

<pallas_src>
import math

import jax
import jax.numpy as jnp
from jax.experimental import pallas as pl
from jax.experimental.pallas import tpu as pltpu


# ----------------------------------------------------------------------------
# Glue: sinusoidal timestep embedding (matches guided-diffusion timestep_embedding)
# ----------------------------------------------------------------------------
def timestep_embedding(t, dim, max_period=10000):
    half = dim // 2
    freqs = jnp.exp(
        -math.log(max_period) * jnp.arange(half, dtype=jnp.float32) / half
    )
    args = t.astype(jnp.float32)[:, None] * freqs[None, :]
    emb = jnp.concatenate([jnp.cos(args), jnp.sin(args)], axis=-1)
    if dim % 2:
        emb = jnp.concatenate([emb, jnp.zeros_like(emb[:, :1])], axis=-1)
    return emb


def _silu(v):
    return v * jax.nn.sigmoid(v)


# ----------------------------------------------------------------------------
# Pallas kernel: full MLP forward for one batch tile
#   t_module / x_module / out_module with the fusions described above.
# ----------------------------------------------------------------------------
def toyy_kernel(
    x_ref, temb_ref,
    wt1_ref, bt1_ref, wt2p_ref,
    wx1_ref, bx1_ref, wx2_ref, bx2_ref, wx3p_ref,
    bo1p_ref, wo2_ref, bo2_ref, wo3r_ref, bo3_ref,
    out_ref,
):
    f32 = jnp.float32
    bf16 = jnp.bfloat16

    # ---- t_module (second linear fused with out_module's t-half) ----
    temb = temb_ref[...].astype(bf16)
    h_t = jnp.dot(temb, wt1_ref[...], preferred_element_type=f32) + bt1_ref[...]
    h_t = _silu(h_t)
    h_t = jnp.dot(h_t.astype(bf16), wt2p_ref[...], preferred_element_type=f32)

    # ---- x_module ----
    # First linear has K = data_dim (=2): do it on the VPU as broadcast FMAs
    # instead of a padded MXU pass.
    x = x_ref[...]                                  # (TB, data_dim) f32
    tb = x.shape[0]
    hid = bx1_ref.shape[-1]
    h_x = jnp.broadcast_to(bx1_ref[...], (tb, hid))
    for d in range(x.shape[1]):                     # static, tiny
        h_x = h_x + x[:, d:d + 1] * wx1_ref[d:d + 1, :]
    h_x = _silu(h_x)
    h_x = _silu(
        jnp.dot(h_x.astype(bf16), wx2_ref[...], preferred_element_type=f32)
        + bx2_ref[...]
    )
    # third x-linear fused with out_module's x-half
    h_x = jnp.dot(h_x.astype(bf16), wx3p_ref[...], preferred_element_type=f32)

    # ---- out_module on cat([x_out, t_out], dim=1) (realized as sum of halves) ----
    h = _silu(h_x + h_t + bo1p_ref[...])
    h = _silu(
        jnp.dot(h.astype(bf16), wo2_ref[...], preferred_element_type=f32)
        + bo2_ref[...]
    )
    # Final N=1 linear as VPU multiply + lane reduction (XLU), no MXU pass.
    out = jnp.sum(h * wo3r_ref[...], axis=-1, keepdims=True) + bo3_ref[...]

    out_ref[...] = out.astype(out_ref.dtype)


# ----------------------------------------------------------------------------
# Wrapper: padding, batch grid, resident weights
# ----------------------------------------------------------------------------
def toyy_forward(x, t, prepared_params, *, time_embed_dim, tb=256):
    t = jnp.atleast_1d(t)
    temb = timestep_embedding(t, time_embed_dim)

    n, data_dim = x.shape
    ted = temb.shape[1]

    # Pick the batch tile; pad batch to a multiple of it (tail handling).
    if n < tb:
        tb = max(8, ((n + 7) // 8) * 8)
    n_blocks = -(-n // tb)
    n_pad = n_blocks * tb
    if n_pad != n:
        x = jnp.pad(x, ((0, n_pad - n), (0, 0)))
        temb = jnp.pad(temb, ((0, n_pad - n), (0, 0)))

    inputs = (x, temb) + tuple(prepared_params)

    act_x_spec = pl.BlockSpec((tb, data_dim), lambda i: (i, 0))
    act_t_spec = pl.BlockSpec((tb, ted), lambda i: (i, 0))
    # Weights/biases: full-size blocks, constant index_map -> VMEM-resident.
    weight_specs = [pl.BlockSpec(p.shape, lambda i: (0, 0)) for p in prepared_params]

    out = pl.pallas_call(
        toyy_kernel,
        out_shape=jax.ShapeDtypeStruct((n_pad, 1), jnp.float32),
        grid=(n_blocks,),
        in_specs=[act_x_spec, act_t_spec] + weight_specs,
        out_specs=pl.BlockSpec((tb, 1), lambda i: (i, 0)),
        compiler_params=pltpu.CompilerParams(
            dimension_semantics=("parallel",),
        ),
    )(*inputs)

    return out[:n]


# ----------------------------------------------------------------------------
# Deterministic parameter init (PyTorch Linear shapes, stored transposed)
# ----------------------------------------------------------------------------
def init_params(key, data_dim, hid, time_embed_dim):
    def linear(key, fan_in, fan_out):
        kw, kb = jax.random.split(key)
        bound = 1.0 / math.sqrt(fan_in)
        # torch stores (out, in); we keep the transposed (in, out) for `h @ W`
        w = jax.random.uniform(kw, (fan_in, fan_out), jnp.float32, -bound, bound)
        b = jax.random.uniform(kb, (1, fan_out), jnp.float32, -bound, bound)
        return w, b

    keys = jax.random.split(key, 9)
    wt1, bt1 = linear(keys[0], time_embed_dim, hid)
    wt2, bt2 = linear(keys[1], hid, hid)
    wx1, bx1 = linear(keys[2], data_dim, hid)
    wx2, bx2 = linear(keys[3], hid, hid)
    wx3, bx3 = linear(keys[4], hid, hid)
    wo1, bo1 = linear(keys[5], hid + hid, hid)
    wo2, bo2 = linear(keys[6], hid, hid)
    wo3, bo3 = linear(keys[7], hid, 1)
    # split out_module first layer into x-half / t-half (concat order: [x_out, t_out])
    wo1x, wo1t = wo1[:hid], wo1[hid:]
    return (
        wt1, bt1, wt2, bt2,
        wx1, bx1, wx2, bx2, wx3, bx3,
        wo1x, wo1t, bo1, wo2, bo2, wo3, bo3,
    )


# ----------------------------------------------------------------------------
# Fold the activation-free back-to-back linears and cast MXU weights to bf16
# ----------------------------------------------------------------------------
def prepare_params(raw):
    (wt1, bt1, wt2, bt2,
     wx1, bx1, wx2, bx2, wx3, bx3,
     wo1x, wo1t, bo1, wo2, bo2, wo3, bo3) = raw

    bf16 = jnp.bfloat16
    wt2p = wt2 @ wo1t                       # (H, H)
    wx3p = wx3 @ wo1x                       # (H, H)
    bo1p = bo1 + bx3 @ wo1x + bt2 @ wo1t    # (1, H)
    wo3r = wo3.T                            # (1, H) for lane-reduce final layer

    return (
        wt1.astype(bf16), bt1, wt2p.astype(bf16),
        wx1, bx1,                            # VPU path: keep f32
        wx2.astype(bf16), bx2, wx3p.astype(bf16),
        bo1p, wo2.astype(bf16), bo2,
        wo3r, bo3,                           # VPU/XLU path: keep f32
    )


# ----------------------------------------------------------------------------
# Pure-JAX f32 reference (unfused) for validation
# ----------------------------------------------------------------------------
def toyy_reference(x, t, raw, *, time_embed_dim):
    (wt1, bt1, wt2, bt2,
     wx1, bx1, wx2, bx2, wx3, bx3,
     wo1x, wo1t, bo1, wo2, bo2, wo3, bo3) = raw
    t = jnp.atleast_1d(t)
    temb = timestep_embedding(t, time_embed_dim)
    h_t = _silu(temb @ wt1 + bt1) @ wt2 + bt2
    h_x = _silu(x @ wx1 + bx1)
    h_x = _silu(h_x @ wx2 + bx2) @ wx3 + bx3
    h = (jnp.concatenate([h_x, h_t], axis=1)
         @ jnp.concatenate([wo1x, wo1t], axis=0) + bo1)
    h = _silu(_silu(h) @ wo2 + bo2) @ wo3 + bo3
    return h


if __name__ == "__main__":
    data_dim, hidden_dim, time_embed_dim = 2, 128, 128

    key = jax.random.PRNGKey(0)
    k_params, k_x1, k_t1, k_x2, k_t2 = jax.random.split(key, 5)

    raw = init_params(k_params, data_dim, hidden_dim, time_embed_dim)
    prepared = prepare_params(raw)

    # bf16 MXU inputs with f32 accumulation -> relaxed tolerance vs f32 reference.
    def check(x, t):
        out = toyy_forward(x, t, prepared, time_embed_dim=time_embed_dim)
        out = jax.block_until_ready(out)
        ref = toyy_reference(x, t, raw, time_embed_dim=time_embed_dim)
        assert out.shape == ref.shape, (out.shape, ref.shape)
        assert jnp.allclose(out, ref, atol=3e-2, rtol=3e-2), "mismatch vs reference"

    # Small batch (single-block grid).
    x1 = jax.random.normal(k_x1, (8, data_dim), dtype=jnp.float32)
    t1 = jax.random.uniform(k_t1, (8,), jnp.float32, 0.0, 1000.0)
    check(x1, t1)

    # Larger batch exercising multi-block grid + padded tail.
    x2 = jax.random.normal(k_x2, (300, data_dim), dtype=jnp.float32)
    t2 = jax.random.uniform(k_t2, (300,), jnp.float32, 0.0, 1000.0)
    check(x2, t2)

    print("KERNEL_OK")
</pallas_src>

<mosaic_0001>
module attributes {stable_mosaic.version = 11 : i64} {
  func.func @toyy_kernel(%arg0: i32, %arg1: memref<8x2xf32, #tpu.memory_space<vmem>>, %arg2: memref<8x128xf32, #tpu.memory_space<vmem>>, %arg3: memref<128x128xbf16, #tpu.memory_space<vmem>>, %arg4: memref<1x128xf32, #tpu.memory_space<vmem>>, %arg5: memref<128x128xbf16, #tpu.memory_space<vmem>>, %arg6: memref<2x128xf32, #tpu.memory_space<vmem>>, %arg7: memref<1x128xf32, #tpu.memory_space<vmem>>, %arg8: memref<128x128xbf16, #tpu.memory_space<vmem>>, %arg9: memref<1x128xf32, #tpu.memory_space<vmem>>, %arg10: memref<128x128xbf16, #tpu.memory_space<vmem>>, %arg11: memref<1x128xf32, #tpu.memory_space<vmem>>, %arg12: memref<128x128xbf16, #tpu.memory_space<vmem>>, %arg13: memref<1x128xf32, #tpu.memory_space<vmem>>, %arg14: memref<1x128xf32, #tpu.memory_space<vmem>>, %arg15: memref<1x1xf32, #tpu.memory_space<vmem>>, %arg16: memref<8x1xf32, #tpu.memory_space<vmem>>) attributes {dimension_semantics = [#tpu.dimension_semantics<parallel>], iteration_bounds = array<i64: 1>, scalar_prefetch = 0 : i64, scratch_operands = 0 : i64, tpu.core_type = #tpu.core_type<tc>, window_params = [{transform_indices = @transform_0, window_bounds = array<i64: 8, 2>}, {transform_indices = @transform_1, window_bounds = array<i64: 8, 128>}, {pipeline_mode = #tpu.pipeline_mode<synchronous>, transform_indices = @transform_2, window_bounds = array<i64: 128, 128>}, {pipeline_mode = #tpu.pipeline_mode<synchronous>, transform_indices = @transform_3, window_bounds = array<i64: 1, 128>}, {pipeline_mode = #tpu.pipeline_mode<synchronous>, transform_indices = @transform_4, window_bounds = array<i64: 128, 128>}, {pipeline_mode = #tpu.pipeline_mode<synchronous>, transform_indices = @transform_5, window_bounds = array<i64: 2, 128>}, {pipeline_mode = #tpu.pipeline_mode<synchronous>, transform_indices = @transform_6, window_bounds = array<i64: 1, 128>}, {pipeline_mode = #tpu.pipeline_mode<synchronous>, transform_indices = @transform_7, window_bounds = array<i64: 128, 128>}, {pipeline_mode = #tpu.pipeline_mode<synchronous>, transform_indices = @transform_8, window_bounds = array<i64: 1, 128>}, {pipeline_mode = #tpu.pipeline_mode<synchronous>, transform_indices = @transform_9, window_bounds = array<i64: 128, 128>}, {pipeline_mode = #tpu.pipeline_mode<synchronous>, transform_indices = @transform_10, window_bounds = array<i64: 1, 128>}, {pipeline_mode = #tpu.pipeline_mode<synchronous>, transform_indices = @transform_11, window_bounds = array<i64: 128, 128>}, {pipeline_mode = #tpu.pipeline_mode<synchronous>, transform_indices = @transform_12, window_bounds = array<i64: 1, 128>}, {pipeline_mode = #tpu.pipeline_mode<synchronous>, transform_indices = @transform_13, window_bounds = array<i64: 1, 128>}, {pipeline_mode = #tpu.pipeline_mode<synchronous>, transform_indices = @transform_14, window_bounds = array<i64: 1, 1>}, {transform_indices = @transform_15, window_bounds = array<i64: 8, 1>}]} {
    %c0 = arith.constant 0 : index
    %c0_0 = arith.constant 0 : index
    %0 = vector.load %arg2[%c0, %c0_0] : memref<8x128xf32, #tpu.memory_space<vmem>>, vector<8x128xf32>
    %1 = arith.truncf %0 : vector<8x128xf32> to vector<8x128xbf16>
    %c0_1 = arith.constant 0 : index
    %c0_2 = arith.constant 0 : index
    %2 = vector.load %arg3[%c0_1, %c0_2] : memref<128x128xbf16, #tpu.memory_space<vmem>>, vector<128x128xbf16>
    %cst = arith.constant dense<0.000000e+00> : vector<8x128xf32>
    %3 = tpu.matmul %1, %2, %cst {dimension_numbers = #tpu.dot_dimension_numbers<[1], [0], [0], [1], [0, 0, 1, 1], [], []>} : vector<8x128xbf16>, vector<128x128xbf16>, vector<8x128xf32> -> vector<8x128xf32>
    %c0_3 = arith.constant 0 : index
    %c0_4 = arith.constant 0 : index
    %4 = vector.load %arg4[%c0_3, %c0_4] : memref<1x128xf32, #tpu.memory_space<vmem>>, vector<1x128xf32>
    %5 = vector.broadcast %4 : vector<1x128xf32> to vector<8x128xf32>
    %6 = arith.addf %3, %5 : vector<8x128xf32>
    %7 = arith.negf %6 : vector<8x128xf32>
    %8 = math.exp %7 : vector<8x128xf32>
    %cst_5 = arith.constant 1.000000e+00 : f32
    %9 = vector.broadcast %cst_5 : f32 to vector<8x128xf32>
    %10 = arith.addf %9, %8 : vector<8x128xf32>
    %11 = arith.divf %9, %10 : vector<8x128xf32>
    %12 = arith.mulf %6, %11 : vector<8x128xf32>
    %13 = arith.truncf %12 : vector<8x128xf32> to vector<8x128xbf16>
    %c0_6 = arith.constant 0 : index
    %c0_7 = arith.constant 0 : index
    %14 = vector.load %arg5[%c0_6, %c0_7] : memref<128x128xbf16, #tpu.memory_space<vmem>>, vector<128x128xbf16>
    %cst_8 = arith.constant dense<0.000000e+00> : vector<8x128xf32>
    %15 = tpu.matmul %13, %14, %cst_8 {dimension_numbers = #tpu.dot_dimension_numbers<[1], [0], [0], [1], [0, 0, 1, 1], [], []>} : vector<8x128xbf16>, vector<128x128xbf16>, vector<8x128xf32> -> vector<8x128xf32>
    %c0_9 = arith.constant 0 : index
    %c0_10 = arith.constant 0 : index
    %16 = vector.load %arg1[%c0_9, %c0_10] : memref<8x2xf32, #tpu.memory_space<vmem>>, vector<8x2xf32>
    %c0_11 = arith.constant 0 : index
    %c0_12 = arith.constant 0 : index
    %17 = vector.load %arg7[%c0_11, %c0_12] : memref<1x128xf32, #tpu.memory_space<vmem>>, vector<1x128xf32>
    %18 = vector.shape_cast %17 : vector<1x128xf32> to vector<1x128xf32>
    %19 = vector.broadcast %18 : vector<1x128xf32> to vector<8x128xf32>
    %20 = vector.extract_strided_slice %16 {offsets = [0, 0], sizes = [8, 1], strides = [1, 1]} : vector<8x2xf32> to vector<8x1xf32>
    %c0_13 = arith.constant 0 : index
    %c0_14 = arith.constant 0 : index
    %21 = vector.load %arg6[%c0_13, %c0_14] : memref<2x128xf32, #tpu.memory_space<vmem>>, vector<1x128xf32>
    %22 = vector.broadcast %20 : vector<8x1xf32> to vector<8x128xf32>
    %23 = vector.broadcast %21 : vector<1x128xf32> to vector<8x128xf32>
    %24 = arith.mulf %22, %23 : vector<8x128xf32>
    %25 = arith.addf %19, %24 : vector<8x128xf32>
    %26 = vector.extract_strided_slice %16 {offsets = [0, 1], sizes = [8, 1], strides = [1, 1]} : vector<8x2xf32> to vector<8x1xf32>
    %c1 = arith.constant 1 : index
    %c0_15 = arith.constant 0 : index
    %27 = vector.load %arg6[%c1, %c0_15] : memref<2x128xf32, #tpu.memory_space<vmem>>, vector<1x128xf32>
    %28 = vector.broadcast %26 : vector<8x1xf32> to vector<8x128xf32>
    %29 = vector.broadcast %27 : vector<1x128xf32> to vector<8x128xf32>
    %30 = arith.mulf %28, %29 : vector<8x128xf32>
    %31 = arith.addf %25, %30 : vector<8x128xf32>
    %32 = arith.negf %31 : vector<8x128xf32>
    %33 = math.exp %32 : vector<8x128xf32>
    %cst_16 = arith.constant 1.000000e+00 : f32
    %34 = vector.broadcast %cst_16 : f32 to vector<8x128xf32>
    %35 = arith.addf %34, %33 : vector<8x128xf32>
    %36 = arith.divf %34, %35 : vector<8x128xf32>
    %37 = arith.mulf %31, %36 : vector<8x128xf32>
    %38 = arith.truncf %37 : vector<8x128xf32> to vector<8x128xbf16>
    %c0_17 = arith.constant 0 : index
    %c0_18 = arith.constant 0 : index
    %39 = vector.load %arg8[%c0_17, %c0_18] : memref<128x128xbf16, #tpu.memory_space<vmem>>, vector<128x128xbf16>
    %cst_19 = arith.constant dense<0.000000e+00> : vector<8x128xf32>
    %40 = tpu.matmul %38, %39, %cst_19 {dimension_numbers = #tpu.dot_dimension_numbers<[1], [0], [0], [1], [0, 0, 1, 1], [], []>} : vector<8x128xbf16>, vector<128x128xbf16>, vector<8x128xf32> -> vector<8x128xf32>
    %c0_20 = arith.constant 0 : index
    %c0_21 = arith.constant 0 : index
    %41 = vector.load %arg9[%c0_20, %c0_21] : memref<1x128xf32, #tpu.memory_space<vmem>>, vector<1x128xf32>
    %42 = vector.broadcast %41 : vector<1x128xf32> to vector<8x128xf32>
    %43 = arith.addf %40, %42 : vector<8x128xf32>
    %44 = arith.negf %43 : vector<8x128xf32>
    %45 = math.exp %44 : vector<8x128xf32>
    %cst_22 = arith.constant 1.000000e+00 : f32
    %46 = vector.broadcast %cst_22 : f32 to vector<8x128xf32>
    %47 = arith.addf %46, %45 : vector<8x128xf32>
    %48 = arith.divf %46, %47 : vector<8x128xf32>
    %49 = arith.mulf %43, %48 : vector<8x128xf32>
    %50 = arith.truncf %49 : vector<8x128xf32> to vector<8x128xbf16>
    %c0_23 = arith.constant 0 : index
    %c0_24 = arith.constant 0 : index
    %51 = vector.load %arg10[%c0_23, %c0_24] : memref<128x128xbf16, #tpu.memory_space<vmem>>, vector<128x128xbf16>
    %cst_25 = arith.constant dense<0.000000e+00> : vector<8x128xf32>
    %52 = tpu.matmul %50, %51, %cst_25 {dimension_numbers = #tpu.dot_dimension_numbers<[1], [0], [0], [1], [0, 0, 1, 1], [], []>} : vector<8x128xbf16>, vector<128x128xbf16>, vector<8x128xf32> -> vector<8x128xf32>
    %53 = arith.addf %52, %15 : vector<8x128xf32>
    %c0_26 = arith.constant 0 : index
    %c0_27 = arith.constant 0 : index
    %54 = vector.load %arg11[%c0_26, %c0_27] : memref<1x128xf32, #tpu.memory_space<vmem>>, vector<1x128xf32>
    %55 = vector.broadcast %54 : vector<1x128xf32> to vector<8x128xf32>
    %56 = arith.addf %53, %55 : vector<8x128xf32>
    %57 = arith.negf %56 : vector<8x128xf32>
    %58 = math.exp %57 : vector<8x128xf32>
    %cst_28 = arith.constant 1.000000e+00 : f32
    %59 = vector.broadcast %cst_28 : f32 to vector<8x128xf32>
    %60 = arith.addf %59, %58 : vector<8x128xf32>
    %61 = arith.divf %59, %60 : vector<8x128xf32>
    %62 = arith.mulf %56, %61 : vector<8x128xf32>
    %63 = arith.truncf %62 : vector<8x128xf32> to vector<8x128xbf16>
    %c0_29 = arith.constant 0 : index
    %c0_30 = arith.constant 0 : index
    %64 = vector.load %arg12[%c0_29, %c0_30] : memref<128x128xbf16, #tpu.memory_space<vmem>>, vector<128x128xbf16>
    %cst_31 = arith.constant dense<0.000000e+00> : vector<8x128xf32>
    %65 = tpu.matmul %63, %64, %cst_31 {dimension_numbers = #tpu.dot_dimension_numbers<[1], [0], [0], [1], [0, 0, 1, 1], [], []>} : vector<8x128xbf16>, vector<128x128xbf16>, vector<8x128xf32> -> vector<8x128xf32>
    %c0_32 = arith.constant 0 : index
    %c0_33 = arith.constant 0 : index
    %66 = vector.load %arg13[%c0_32, %c0_33] : memref<1x128xf32, #tpu.memory_space<vmem>>, vector<1x128xf32>
    %67 = vector.broadcast %66 : vector<1x128xf32> to vector<8x128xf32>
    %68 = arith.addf %65, %67 : vector<8x128xf32>
    %69 = arith.negf %68 : vector<8x128xf32>
    %70 = math.exp %69 : vector<8x128xf32>
    %cst_34 = arith.constant 1.000000e+00 : f32
    %71 = vector.broadcast %cst_34 : f32 to vector<8x128xf32>
    %72 = arith.addf %71, %70 : vector<8x128xf32>
    %73 = arith.divf %71, %72 : vector<8x128xf32>
    %74 = arith.mulf %68, %73 : vector<8x128xf32>
    %c0_35 = arith.constant 0 : index
    %c0_36 = arith.constant 0 : index
    %75 = vector.load %arg14[%c0_35, %c0_36] : memref<1x128xf32, #tpu.memory_space<vmem>>, vector<1x128xf32>
    %76 = vector.broadcast %75 : vector<1x128xf32> to vector<8x128xf32>
    %77 = arith.mulf %74, %76 : vector<8x128xf32>
    %cst_37 = arith.constant dense<0.000000e+00> : vector<8xf32>
    %78 = vector.multi_reduction <add>, %77, %cst_37 [1] : vector<8x128xf32> to vector<8xf32>
    %79 = vector.shape_cast %78 : vector<8xf32> to vector<8x1xf32>
    %c0_38 = arith.constant 0 : index
    %c0_39 = arith.constant 0 : index
    %80 = vector.load %arg15[%c0_38, %c0_39] : memref<1x1xf32, #tpu.memory_space<vmem>>, vector<1x1xf32>
    %81 = vector.broadcast %80 : vector<1x1xf32> to vector<8x1xf32>
    %82 = arith.addf %79, %81 : vector<8x1xf32>
    %c0_40 = arith.constant 0 : index
    %c0_41 = arith.constant 0 : index
    %83 = vector.load %arg16[%c0_40, %c0_41] : memref<8x1xf32, #tpu.memory_space<vmem>>, vector<8x1xf32>
    tpu.vector_store %arg16[%c0_40, %c0_41], %82 {strides = array<i32>} : memref<8x1xf32, #tpu.memory_space<vmem>>, vector<8x1xf32>,
    return
  }
  func.func @transform_0(%arg0: i32) -> (i32, i32) {
    %c0_i32 = arith.constant 0 : i32
    %c0_i32_0 = arith.constant 0 : i32
    return %arg0, %c0_i32 : i32, i32
  }
  func.func @transform_1(%arg0: i32) -> (i32, i32) {
    %c0_i32 = arith.constant 0 : i32
    %c0_i32_0 = arith.constant 0 : i32
    return %arg0, %c0_i32 : i32, i32
  }
  func.func @transform_2(%arg0: i32) -> (i32, i32) {
    %c0_i32 = arith.constant 0 : i32
    %c0_i32_0 = arith.constant 0 : i32
    %c0_i32_1 = arith.constant 0 : i32
    return %c0_i32, %c0_i32_0 : i32, i32
  }
  func.func @transform_3(%arg0: i32) -> (i32, i32) {
    %c0_i32 = arith.constant 0 : i32
    %c0_i32_0 = arith.constant 0 : i32
    %c0_i32_1 = arith.constant 0 : i32
    return %c0_i32, %c0_i32_0 : i32, i32
  }
  func.func @transform_4(%arg0: i32) -> (i32, i32) {
    %c0_i32 = arith.constant 0 : i32
    %c0_i32_0 = arith.constant 0 : i32
    %c0_i32_1 = arith.constant 0 : i32
    return %c0_i32, %c0_i32_0 : i32, i32
  }
  func.func @transform_5(%arg0: i32) -> (i32, i32) {
    %c0_i32 = arith.constant 0 : i32
    %c0_i32_0 = arith.constant 0 : i32
    %c0_i32_1 = arith.constant 0 : i32
    return %c0_i32, %c0_i32_0 : i32, i32
  }
  func.func @transform_6(%arg0: i32) -> (i32, i32) {
    %c0_i32 = arith.constant 0 : i32
    %c0_i32_0 = arith.constant 0 : i32
    %c0_i32_1 = arith.constant 0 : i32
    return %c0_i32, %c0_i32_0 : i32, i32
  }
  func.func @transform_7(%arg0: i32) -> (i32, i32) {
    %c0_i32 = arith.constant 0 : i32
    %c0_i32_0 = arith.constant 0 : i32
    %c0_i32_1 = arith.constant 0 : i32
    return %c0_i32, %c0_i32_0 : i32, i32
  }
  func.func @transform_8(%arg0: i32) -> (i32, i32) {
    %c0_i32 = arith.constant 0 : i32
    %c0_i32_0 = arith.constant 0 : i32
    %c0_i32_1 = arith.constant 0 : i32
    return %c0_i32, %c0_i32_0 : i32, i32
  }
  func.func @transform_9(%arg0: i32) -> (i32, i32) {
    %c0_i32 = arith.constant 0 : i32
    %c0_i32_0 = arith.constant 0 : i32
    %c0_i32_1 = arith.constant 0 : i32
    return %c0_i32, %c0_i32_0 : i32, i32
  }
  func.func @transform_10(%arg0: i32) -> (i32, i32) {
    %c0_i32 = arith.constant 0 : i32
    %c0_i32_0 = arith.constant 0 : i32
    %c0_i32_1 = arith.constant 0 : i32
    return %c0_i32, %c0_i32_0 : i32, i32
  }
  func.func @transform_11(%arg0: i32) -> (i32, i32) {
    %c0_i32 = arith.constant 0 : i32
    %c0_i32_0 = arith.constant 0 : i32
    %c0_i32_1 = arith.constant 0 : i32
    return %c0_i32, %c0_i32_0 : i32, i32
  }
  func.func @transform_12(%arg0: i32) -> (i32, i32) {
    %c0_i32 = arith.constant 0 : i32
    %c0_i32_0 = arith.constant 0 : i32
    %c0_i32_1 = arith.constant 0 : i32
    return %c0_i32, %c0_i32_0 : i32, i32
  }
  func.func @transform_13(%arg0: i32) -> (i32, i32) {
    %c0_i32 = arith.constant 0 : i32
    %c0_i32_0 = arith.constant 0 : i32
    %c0_i32_1 = arith.constant 0 : i32
    return %c0_i32, %c0_i32_0 : i32, i32
  }
  func.func @transform_14(%arg0: i32) -> (i32, i32) {
    %c0_i32 = arith.constant 0 : i32
    %c0_i32_0 = arith.constant 0 : i32
    %c0_i32_1 = arith.constant 0 : i32
    return %c0_i32, %c0_i32_0 : i32, i32
  }
  func.func @transform_15(%arg0: i32) -> (i32, i32) {
    %c0_i32 = arith.constant 0 : i32
    %c0_i32_0 = arith.constant 0 : i32
    return %arg0, %c0_i32 : i32, i32
  }
}

</mosaic_0001>

<llo_original>
// kernel: tpu_custom_call.1
$region0: #{tpu_custom_call.1}
  #allocation0 [shape = 'u32[]', space=smem, size = 0x4, offset = 0x4, fixed_abs, tag = 'smem constant byte address 0x4 - core index']
  #allocation1 [shape = 'u32[72,128]{1,0:T(1,128)}', space=vmem, size = 0x9000, scoped, tag = 'internal scratch']
  #allocation2 [shape = 'f32[1,1]{1,0:T(1,128)S(1)}', space=vmem, size = 0x200, scoped, tag = 'scoped memory for tpu_custom_call.1']
  %s0 = inlined_call_operand.vmem [shape: f32[8,2], index: 0, kind: input, shape index: {}]
  %s1 = inlined_call_operand.vmem [shape: f32[8,128], index: 1, kind: input, shape index: {}]
  %s2 = inlined_call_operand.hbm [shape: bf16[128,128], index: 2, kind: input, shape index: {}]
  %s3 = inlined_call_operand.vmem [shape: f32[1,128], index: 3, kind: input, shape index: {}]
  %s4 = inlined_call_operand.hbm [shape: bf16[128,128], index: 4, kind: input, shape index: {}]
  %s5 = inlined_call_operand.vmem [shape: f32[2,128], index: 5, kind: input, shape index: {}]
  %s6 = inlined_call_operand.vmem [shape: f32[1,128], index: 6, kind: input, shape index: {}]
  %s7 = inlined_call_operand.hbm [shape: bf16[128,128], index: 7, kind: input, shape index: {}]
  %s8 = inlined_call_operand.vmem [shape: f32[1,128], index: 8, kind: input, shape index: {}]
  %s9 = inlined_call_operand.hbm [shape: bf16[128,128], index: 9, kind: input, shape index: {}]
  %s10 = inlined_call_operand.vmem [shape: f32[1,128], index: 10, kind: input, shape index: {}]
  %s11 = inlined_call_operand.hbm [shape: bf16[128,128], index: 11, kind: input, shape index: {}]
  %s12 = inlined_call_operand.vmem [shape: f32[1,128], index: 12, kind: input, shape index: {}]
  %s13 = inlined_call_operand.vmem [shape: f32[1,128], index: 13, kind: input, shape index: {}]
  %s14 = inlined_call_operand.<no memory space> [shape: f32[1,1], index: 14, kind: input, shape index: {}]
  %s15 = inlined_call_operand.vmem [shape: f32[8,1], index: 15, kind: output, shape index: {}]
  %s16 = sld [smem:[#allocation0]]
  $region90: #{tpu_custom_call.1} parent=0
    _
  %s18 = ssub.s32 1, %s16
  %s19 = scalar_select 0, %s18, %s16
  %v20 = vstv %s14
  %21 = vst [vmem:[#allocation2] sm:$0x1] %v20
  $region1: #{tpu_custom_call.1} parent=0
    #allocation3 [shape = 'u8[32768]{0}', space=vmem, size = 0x8000, scoped, tag = 'input window, operand 2, single buffered']
    #allocation4 [shape = 's32[1]{0}', space=sflag, size = 0x4, scoped, tag = 'scoped memory for tpu_custom_call.1']
    #allocation5 [shape = 'u8[32768]{0}', space=vmem, size = 0x8000, scoped, tag = 'input window, operand 4, single buffered']
    #allocation6 [shape = 's32[1]{0}', space=sflag, size = 0x4, scoped, tag = 'scoped memory for tpu_custom_call.1']
    #allocation7 [shape = 'u8[32768]{0}', space=vmem, size = 0x8000, scoped, tag = 'input window, operand 7, single buffered']
    #allocation8 [shape = 'u8[32768]{0}', space=vmem, size = 0x8000, scoped, tag = 'input window, operand 9, single buffered']
    #allocation9 [shape = 's32[1]{0}', space=sflag, size = 0x4, scoped, tag = 'scoped memory for tpu_custom_call.1']
    #allocation10 [shape = 'u8[32768]{0}', space=vmem, size = 0x8000, scoped, tag = 'input window, operand 11, single buffered']
    %22 = vsyncpa [#allocation4], 0
    %23 = vsyncpa [#allocation6], 0
    %24 = vsyncpa [#allocation9], 0
    // Predicated region
    $region2: #{tpu_custom_call.1} parent=1 // pred_check
      _
    $region3: #{tpu_custom_call.1} parent=1 // pred_check_branch
      %26 = sbr.rel (0) target = $region5
    $region4: #{tpu_custom_call.1} parent=1 // pred_region
      _
    $region5: #{tpu_custom_call.1} parent=1 // pred_fallthru
      _
    // Predicated region
    $region6: #{tpu_custom_call.1} parent=1 // pred_check
      _
    $region7: #{tpu_custom_call.1} parent=1 // pred_check_branch
      %28 = sbr.rel (0) target = $region9
    $region8: #{tpu_custom_call.1} parent=1 // pred_region
      _
    $region9: #{tpu_custom_call.1} parent=1 // pred_fallthru
      _
    // Predicated region
    $region10: #{tpu_custom_call.1} parent=1 // pred_check
      _
    $region11: #{tpu_custom_call.1} parent=1 // pred_check_branch
      %30 = sbr.rel (0) target = $region13
    $region12: #{tpu_custom_call.1} parent=1 // pred_region
      %32 = vsyncadd [#allocation4], 0
      %s33 = sshll.u32 %s2, 4
      %s34 = int_to_ptr.hbm [resolvable:$true] %s33
      %s35 = sshll.u32 [#allocation3], 4
      %s36 = int_to_ptr.vmem [resolvable:$true] %s35
      %41 = dma.hbm_to_vmem [thread:$0]  %s34, 1024, %s36, [#allocation4], 64, 64, 4
    $region13: #{tpu_custom_call.1} parent=1 // pred_fallthru
      _
    // Predicated region
    $region14: #{tpu_custom_call.1} parent=1 // pred_check
      _
    $region15: #{tpu_custom_call.1} parent=1 // pred_check_branch
      %43 = sbr.rel (0) target = $region17
    $region16: #{tpu_custom_call.1} parent=1 // pred_region
      _
    $region17: #{tpu_custom_call.1} parent=1 // pred_fallthru
      _
    // Predicated region
    $region18: #{tpu_custom_call.1} parent=1 // pred_check
      _
    $region19: #{tpu_custom_call.1} parent=1 // pred_check_branch
      %45 = sbr.rel (0) target = $region21
    $region20: #{tpu_custom_call.1} parent=1 // pred_region
      %47 = vsyncadd [#allocation6], 0
      %s48 = sshll.u32 %s4, 4
      %s49 = int_to_ptr.hbm [resolvable:$true] %s48
      %s50 = sshll.u32 [#allocation5], 4
      %s51 = int_to_ptr.vmem [resolvable:$true] %s50
      %56 = dma.hbm_to_vmem [thread:$0]  %s49, 1024, %s51, [#allocation6], 64, 64, 4
    $region21: #{tpu_custom_call.1} parent=1 // pred_fallthru
      _
    // Predicated region
    $region22: #{tpu_custom_call.1} parent=1 // pred_check
      _
    $region23: #{tpu_custom_call.1} parent=1 // pred_check_branch
      %58 = sbr.rel (0) target = $region25
    $region24: #{tpu_custom_call.1} parent=1 // pred_region
      _
    $region25: #{tpu_custom_call.1} parent=1 // pred_fallthru
      _
    // Predicated region
    $region26: #{tpu_custom_call.1} parent=1 // pred_check
      _
    $region27: #{tpu_custom_call.1} parent=1 // pred_check_branch
      %60 = sbr.rel (0) target = $region29
    $region28: #{tpu_custom_call.1} parent=1 // pred_region
      _
    $region29: #{tpu_custom_call.1} parent=1 // pred_fallthru
      _
    // Predicated region
    $region30: #{tpu_custom_call.1} parent=1 // pred_check
      _
    $region31: #{tpu_custom_call.1} parent=1 // pred_check_branch
      %62 = sbr.rel (0) target = $region33
    $region32: #{tpu_custom_call.1} parent=1 // pred_region
      %64 = vsyncadd [#allocation6], 0
      %s65 = sshll.u32 %s7, 4
      %s66 = int_to_ptr.hbm [resolvable:$true] %s65
      %s67 = sshll.u32 [#allocation7], 4
      %s68 = int_to_ptr.vmem [resolvable:$true] %s67
      %73 = dma.hbm_to_vmem [thread:$0]  %s66, 1024, %s68, [#allocation6], 64, 64, 4
    $region33: #{tpu_custom_call.1} parent=1 // pred_fallthru
      _
    // Predicated region
    $region34: #{tpu_custom_call.1} parent=1 // pred_check
      _
    $region35: #{tpu_custom_call.1} parent=1 // pred_check_branch
      %75 = sbr.rel (0) target = $region37
    $region36: #{tpu_custom_call.1} parent=1 // pred_region
      _
    $region37: #{tpu_custom_call.1} parent=1 // pred_fallthru
      _
    // Predicated region
    $region38: #{tpu_custom_call.1} parent=1 // pred_check
      _
    $region39: #{tpu_custom_call.1} parent=1 // pred_check_branch
      %77 = sbr.rel (0) target = $region41
    $region40: #{tpu_custom_call.1} parent=1 // pred_region
      %79 = vsyncadd [#allocation9], 0
      %s80 = sshll.u32 %s9, 4
      %s81 = int_to_ptr.hbm [resolvable:$true] %s80
      %s82 = sshll.u32 [#allocation8], 4
      %s83 = int_to_ptr.vmem [resolvable:$true] %s82
      %88 = dma.hbm_to_vmem [thread:$0]  %s81, 1024, %s83, [#allocation9], 64, 64, 4
    $region41: #{tpu_custom_call.1} parent=1 // pred_fallthru
      _
    // Predicated region
    $region42: #{tpu_custom_call.1} parent=1 // pred_check
      _
    $region43: #{tpu_custom_call.1} parent=1 // pred_check_branch
      %90 = sbr.rel (0) target = $region45
    $region44: #{tpu_custom_call.1} parent=1 // pred_region
      _
    $region45: #{tpu_custom_call.1} parent=1 // pred_fallthru
      _
    // Predicated region
    $region46: #{tpu_custom_call.1} parent=1 // pred_check
      _
    $region47: #{tpu_custom_call.1} parent=1 // pred_check_branch
      %92 = sbr.rel (0) target = $region49
    $region48: #{tpu_custom_call.1} parent=1 // pred_region
      %94 = vsyncadd [#allocation9], 0
      %s95 = sshll.u32 %s11, 4
      %s96 = int_to_ptr.hbm [resolvable:$true] %s95
      %s97 = sshll.u32 [#allocation10], 4
      %s98 = int_to_ptr.vmem [resolvable:$true] %s97
      %103 = dma.hbm_to_vmem [thread:$0]  %s96, 1024, %s98, [#allocation9], 64, 64, 4
    $region49: #{tpu_custom_call.1} parent=1 // pred_fallthru
      _
    // Predicated region
    $region50: #{tpu_custom_call.1} parent=1 // pred_check
      _
    $region51: #{tpu_custom_call.1} parent=1 // pred_check_branch
      %105 = sbr.rel (0) target = $region53
    $region52: #{tpu_custom_call.1} parent=1 // pred_region
      _
    $region53: #{tpu_custom_call.1} parent=1 // pred_fallthru
      _
    // Predicated region
    $region54: #{tpu_custom_call.1} parent=1 // pred_check
      _
    $region55: #{tpu_custom_call.1} parent=1 // pred_check_branch
      %107 = sbr.rel (0) target = $region57
    $region56: #{tpu_custom_call.1} parent=1 // pred_region
      _
    $region57: #{tpu_custom_call.1} parent=1 // pred_fallthru
      _
    // Predicated region
    $region58: #{tpu_custom_call.1} parent=1 // pred_check
      _
    $region59: #{tpu_custom_call.1} parent=1 // pred_check_branch
      %109 = sbr.rel (0) target = $region61
    $region60: #{tpu_custom_call.1} parent=1 // pred_region
      _
    $region61: #{tpu_custom_call.1} parent=1 // pred_fallthru
      _
    // Predicated region
    $region62: #{tpu_custom_call.1} parent=1 // pred_check
      _
    $region63: #{tpu_custom_call.1} parent=1 // pred_check_branch
      %111 = sbr.rel (0) target = $region65
    $region64: #{tpu_custom_call.1} parent=1 // pred_region
      %113 = dma.done [#allocation4], 1024
    $region65: #{tpu_custom_call.1} parent=1 // pred_fallthru
      _
    // Predicated region
    $region66: #{tpu_custom_call.1} parent=1 // pred_check
      _
    $region67: #{tpu_custom_call.1} parent=1 // pred_check_branch
      %115 = sbr.rel (0) target = $region69
    $region68: #{tpu_custom_call.1} parent=1 // pred_region
      %117 = dma.done [#allocation6], 1024
    $region69: #{tpu_custom_call.1} parent=1 // pred_fallthru
      _
    // Predicated region
    $region70: #{tpu_custom_call.1} parent=1 // pred_check
      _
    $region71: #{tpu_custom_call.1} parent=1 // pred_check_branch
      %119 = sbr.rel (0) target = $region73
    $region72: #{tpu_custom_call.1} parent=1 // pred_region
      %121 = dma.done [#allocation6], 1024
    $region73: #{tpu_custom_call.1} parent=1 // pred_fallthru
      _
    // Predicated region
    $region74: #{tpu_custom_call.1} parent=1 // pred_check
      _
    $region75: #{tpu_custom_call.1} parent=1 // pred_check_branch
      %123 = sbr.rel (0) target = $region77
    $region76: #{tpu_custom_call.1} parent=1 // pred_region
      %125 = dma.done [#allocation9], 1024
    $region77: #{tpu_custom_call.1} parent=1 // pred_fallthru
      _
    // Predicated region
    $region78: #{tpu_custom_call.1} parent=1 // pred_check
      _
    $region79: #{tpu_custom_call.1} parent=1 // pred_check_branch
      %127 = sbr.rel (0) target = $region81
    $region80: #{tpu_custom_call.1} parent=1 // pred_region
      %129 = dma.done [#allocation9], 1024
    $region81: #{tpu_custom_call.1} parent=1 // pred_fallthru
      _
    %v130 = vld [vmem:[%s1] sm:$0xff]
    %v131 = vpack.c.bf16 %v130, %v130
    %v132 = vld [vmem:[#allocation3] sm:$0xf]
    %v133 = vld [vmem:[#allocation3 + $0x4] sm:$0xf]
    %v134 = vld [vmem:[#allocation3 + $0x8] sm:$0xf]
    %v135 = vld [vmem:[#allocation3 + $0xc] sm:$0xf]
    %v136 = vld [vmem:[#allocation3 + $0x10] sm:$0xf]
    %v137 = vld [vmem:[#allocation3 + $0x14] sm:$0xf]
    %v138 = vld [vmem:[#allocation3 + $0x18] sm:$0xf]
    %v139 = vld [vmem:[#allocation3 + $0x1c] sm:$0xf]
    %v140 = vld [vmem:[#allocation3 + $0x20] sm:$0xf]
    %v141 = vld [vmem:[#allocation3 + $0x24] sm:$0xf]
    %v142 = vld [vmem:[#allocation3 + $0x28] sm:$0xf]
    %v143 = vld [vmem:[#allocation3 + $0x2c] sm:$0xf]
    %v144 = vld [vmem:[#allocation3 + $0x30] sm:$0xf]
    %v145 = vld [vmem:[#allocation3 + $0x34] sm:$0xf]
    %v146 = vld [vmem:[#allocation3 + $0x38] sm:$0xf]
    %v147 = vld [vmem:[#allocation3 + $0x3c] sm:$0xf]
    %v148 = vld [vmem:[%s3] sm:$0x1]
    %v150 = vperm.slane %v148, 0
    %v168 = vunpack.c.l.b16 %v132
    %v169 = vunpack.c.l.b16 %v133
    %v170 = vunpack.c.l.b16 %v134
    %v171 = vunpack.c.l.b16 %v135
    %v172 = vunpack.c.l.b16 %v136
    %v173 = vunpack.c.l.b16 %v137
    %v174 = vunpack.c.l.b16 %v138
    %v175 = vunpack.c.l.b16 %v139
    %v176 = vunpack.c.l.b16 %v140
    %v177 = vunpack.c.l.b16 %v141
    %v178 = vunpack.c.l.b16 %v142
    %v179 = vunpack.c.l.b16 %v143
    %v180 = vunpack.c.l.b16 %v144
    %v181 = vunpack.c.l.b16 %v145
    %v182 = vunpack.c.l.b16 %v146
    %v183 = vunpack.c.l.b16 %v147
    %v184 = vpack.c.b16 %v169, %v168
    %v185 = vpack.c.b16 %v171, %v170
    %v186 = vpack.c.b16 %v173, %v172
    %v187 = vpack.c.b16 %v175, %v174
    %v188 = vpack.c.b16 %v177, %v176
    %v189 = vpack.c.b16 %v179, %v178
    %v190 = vpack.c.b16 %v181, %v180
    %v191 = vpack.c.b16 %v183, %v182
    %200 = vmatpush.bf16.msra.mxu0 %v191
    %201 = vmatpush.bf16.msra.mxu0 %v190
    %202 = vmatpush.bf16.msra.mxu0 %v189
    %203 = vmatpush.bf16.msra.mxu0 %v188
    %204 = vmatpush.bf16.msra.mxu0 %v187
    %205 = vmatpush.bf16.msra.mxu0 %v186
    %206 = vmatpush.bf16.msra.mxu0 %v185
    %207 = vmatpush.bf16.msra.mxu0 %v184
    %208 = vmatmul.bf16.gmra.mxu0 %v131
    %v209 = vpop.f32.mrf.mxu0
    %v210 = vadd.f32 %v150, %v209
    %v211 = vpop.f32.mrf.mxu0
    %212 = vdwg.mxu0
    %v213 = vxor.u32 %v210, 2147483648
    %v214 = vmul.f32 %v213, 1.442695
    %v215 = vpow.pop %v214
    %v216 = vadd.f32 %v215, 1.0
    %v217 = vrcp.pop %v216
    %v218 = vmul.f32 %v216, %v217
    %v219 = vsub.f32 1.0, %v218
    %v220 = vmul.f32 %v217, %v219
    %v221 = vadd.f32 %v217, %v220
    %vm222 = vweird.f32 %v216
    %vm223 = vweird.f32 %v217
    %vm224 = vmor %vm222, %vm223
    %v225 = vsel %vm224, %v217, %v221
    %v226 = vand.u32 2147483647, %v216
    %vm227 = vcmp.eq.f32.partialorder %v226, 8.507059e+37
    %v228 = vand.u32 %v216, 2147483648
    %v229 = vor.u32 1.1754944e-38, %v228
    %v230 = vsel %vm227, %v229, %v225
    %v231 = vmul.f32 1.0, %v230
    %v232 = vmul.f32 %v210, %v231
    %v233 = vpack.c.bf16 %v232, %v232
    %v234 = vld [vmem:[#allocation5] sm:$0xf]
    %v235 = vld [vmem:[#allocation5 + $0x4] sm:$0xf]
    %v236 = vld [vmem:[#allocation5 + $0x8] sm:$0xf]
    %v237 = vld [vmem:[#allocation5 + $0xc] sm:$0xf]
    %v238 = vld [vmem:[#allocation5 + $0x10] sm:$0xf]
    %v239 = vld [vmem:[#allocation5 + $0x14] sm:$0xf]
    %v240 = vld [vmem:[#allocation5 + $0x18] sm:$0xf]
    %v241 = vld [vmem:[#allocation5 + $0x1c] sm:$0xf]
    %v242 = vld [vmem:[#allocation5 + $0x20] sm:$0xf]
    %v243 = vld [vmem:[#allocation5 + $0x24] sm:$0xf]
    %v244 = vld [vmem:[#allocation5 + $0x28] sm:$0xf]
    %v245 = vld [vmem:[#allocation5 + $0x2c] sm:$0xf]
    %v246 = vld [vmem:[#allocation5 + $0x30] sm:$0xf]
    %v247 = vld [vmem:[#allocation5 + $0x34] sm:$0xf]
    %v248 = vld [vmem:[#allocation5 + $0x38] sm:$0xf]
    %v249 = vld [vmem:[#allocation5 + $0x3c] sm:$0xf]
    %v266 = vunpack.c.l.b16 %v234
    %v267 = vunpack.c.l.b16 %v235
    %v268 = vunpack.c.l.b16 %v236
    %v269 = vunpack.c.l.b16 %v237
    %v270 = vunpack.c.l.b16 %v238
    %v271 = vunpack.c.l.b16 %v239
    %v272 = vunpack.c.l.b16 %v240
    %v273 = vunpack.c.l.b16 %v241
    %v274 = vunpack.c.l.b16 %v242
    %v275 = vunpack.c.l.b16 %v243
    %v276 = vunpack.c.l.b16 %v244
    %v277 = vunpack.c.l.b16 %v245
    %v278 = vunpack.c.l.b16 %v246
    %v279 = vunpack.c.l.b16 %v247
    %v280 = vunpack.c.l.b16 %v248
    %v281 = vunpack.c.l.b16 %v249
    %v282 = vpack.c.b16 %v267, %v266
    %v283 = vpack.c.b16 %v269, %v268
    %v284 = vpack.c.b16 %v271, %v270
    %v285 = vpack.c.b16 %v273, %v272
    %v286 = vpack.c.b16 %v275, %v274
    %v287 = vpack.c.b16 %v277, %v276
    %v288 = vpack.c.b16 %v279, %v278
    %v289 = vpack.c.b16 %v281, %v280
    %298 = vmatpush.bf16.msra.mxu0 %v289
    %299 = vmatpush.bf16.msra.mxu0 %v288
    %300 = vmatpush.bf16.msra.mxu0 %v287
    %301 = vmatpush.bf16.msra.mxu0 %v286
    %302 = vmatpush.bf16.msra.mxu0 %v285
    %303 = vmatpush.bf16.msra.mxu0 %v284
    %304 = vmatpush.bf16.msra.mxu0 %v283
    %305 = vmatpush.bf16.msra.mxu0 %v282
    %306 = vmatmul.bf16.gmra.mxu0 %v233
    %v307 = vpop.f32.mrf.mxu0
    %v308 = vadd.f32 0.0, %v307
    %v309 = vpop.f32.mrf.mxu0
    %310 = vdwg.mxu0
    %v311 = vld [vmem:[%s0] sm:$0xff]
    %v312 = vld [vmem:[%s6] sm:$0x1]
    %v314 = vperm.slane %v312, 0
    %v316 = vld [vmem:[%s5] sm:$0x1]
    %318 = vset.pattern.permute.xlu0 0
    %319 = vperm.xlu0 %318, %v311
    %v320 = vpop.permute.xlu0 %319
    %v322 = vperm.slane %v316, 0
    %v323 = vmul.f32 %v320, %v322
    %v324 = vadd.f32 %v314, %v323
    %v325 = vld [vmem:[%s5 + $0x1] sm:$0x1]
    %326 = vset.pattern.permute.xlu0 1
    %327 = vperm.xlu0 %326, %v311
    %v328 = vpop.permute.xlu0 %327
    %v330 = vperm.slane %v325, 0
    %v331 = vmul.f32 %v328, %v330
    %v332 = vadd.f32 %v324, %v331
    %v333 = vxor.u32 %v332, 2147483648
    %v334 = vmul.f32 %v333, 1.442695
    %v335 = vpow.pop %v334
    %v336 = vadd.f32 %v335, 1.0
    %v337 = vrcp.pop %v336
    %v338 = vmul.f32 %v336, %v337
    %v339 = vsub.f32 1.0, %v338
    %v340 = vmul.f32 %v337, %v339
    %v341 = vadd.f32 %v337, %v340
    %vm342 = vweird.f32 %v336
    %vm343 = vweird.f32 %v337
    %vm344 = vmor %vm342, %vm343
    %v345 = vsel %vm344, %v337, %v341
    %v346 = vand.u32 2147483647, %v336
    %vm347 = vcmp.eq.f32.partialorder %v346, 8.507059e+37
    %v348 = vand.u32 %v336, 2147483648
    %v349 = vor.u32 1.1754944e-38, %v348
    %v350 = vsel %vm347, %v349, %v345
    %v351 = vmul.f32 1.0, %v350
    %v352 = vmul.f32 %v332, %v351
    %v353 = vpack.c.bf16 %v352, %v352
    %v354 = vld [vmem:[#allocation7] sm:$0xf]
    %v355 = vld [vmem:[#allocation7 + $0x4] sm:$0xf]
    %v356 = vld [vmem:[#allocation7 + $0x8] sm:$0xf]
    %v357 = vld [vmem:[#allocation7 + $0xc] sm:$0xf]
    %v358 = vld [vmem:[#allocation7 + $0x10] sm:$0xf]
    %v359 = vld [vmem:[#allocation7 + $0x14] sm:$0xf]
    %v360 = vld [vmem:[#allocation7 + $0x18] sm:$0xf]
    %v361 = vld [vmem:[#allocation7 + $0x1c] sm:$0xf]
    %v362 = vld [vmem:[#allocation7 + $0x20] sm:$0xf]
    %v363 = vld [vmem:[#allocation7 + $0x24] sm:$0xf]
    %v364 = vld [vmem:[#allocation7 + $0x28] sm:$0xf]
    %v365 = vld [vmem:[#allocation7 + $0x2c] sm:$0xf]
    %v366 = vld [vmem:[#allocation7 + $0x30] sm:$0xf]
    %v367 = vld [vmem:[#allocation7 + $0x34] sm:$0xf]
    %v368 = vld [vmem:[#allocation7 + $0x38] sm:$0xf]
    %v369 = vld [vmem:[#allocation7 + $0x3c] sm:$0xf]
    %v370 = vld [vmem:[%s8] sm:$0x1]
    %v372 = vperm.slane %v370, 0
    %v390 = vunpack.c.l.b16 %v354
    %v391 = vunpack.c.l.b16 %v355
    %v392 = vunpack.c.l.b16 %v356
    %v393 = vunpack.c.l.b16 %v357
    %v394 = vunpack.c.l.b16 %v358
    %v395 = vunpack.c.l.b16 %v359
    %v396 = vunpack.c.l.b16 %v360
    %v397 = vunpack.c.l.b16 %v361
    %v398 = vunpack.c.l.b16 %v362
    %v399 = vunpack.c.l.b16 %v363
    %v400 = vunpack.c.l.b16 %v364
    %v401 = vunpack.c.l.b16 %v365
    %v402 = vunpack.c.l.b16 %v366
    %v403 = vunpack.c.l.b16 %v367
    %v404 = vunpack.c.l.b16 %v368
    %v405 = vunpack.c.l.b16 %v369
    %v406 = vpack.c.b16 %v391, %v390
    %v407 = vpack.c.b16 %v393, %v392
    %v408 = vpack.c.b16 %v395, %v394
    %v409 = vpack.c.b16 %v397, %v396
    %v410 = vpack.c.b16 %v399, %v398
    %v411 = vpack.c.b16 %v401, %v400
    %v412 = vpack.c.b16 %v403, %v402
    %v413 = vpack.c.b16 %v405, %v404
    %422 = vmatpush.bf16.msra.mxu0 %v413
    %423 = vmatpush.bf16.msra.mxu0 %v412
    %424 = vmatpush.bf16.msra.mxu0 %v411
    %425 = vmatpush.bf16.msra.mxu0 %v410
    %426 = vmatpush.bf16.msra.mxu0 %v409
    %427 = vmatpush.bf16.msra.mxu0 %v408
    %428 = vmatpush.bf16.msra.mxu0 %v407
    %429 = vmatpush.bf16.msra.mxu0 %v406
    %430 = vmatmul.bf16.gmra.mxu0 %v353
    %v431 = vpop.f32.mrf.mxu0
    %v432 = vadd.f32 %v372, %v431
    %v433 = vpop.f32.mrf.mxu0
    %434 = vdwg.mxu0
    %v435 = vxor.u32 %v432, 2147483648
    %v436 = vmul.f32 %v435, 1.442695
    %v437 = vpow.pop %v436
    %v438 = vadd.f32 %v437, 1.0
    %v439 = vrcp.pop %v438
    %v440 = vmul.f32 %v438, %v439
    %v441 = vsub.f32 1.0, %v440
    %v442 = vmul.f32 %v439, %v441
    %v443 = vadd.f32 %v439, %v442
    %vm444 = vweird.f32 %v438
    %vm445 = vweird.f32 %v439
    %vm446 = vmor %vm444, %vm445
    %v447 = vsel %vm446, %v439, %v443
    %v448 = vand.u32 2147483647, %v438
    %vm449 = vcmp.eq.f32.partialorder %v448, 8.507059e+37
    %v450 = vand.u32 %v438, 2147483648
    %v451 = vor.u32 1.1754944e-38, %v450
    %v452 = vsel %vm449, %v451, %v447
    %v453 = vmul.f32 1.0, %v452
    %v454 = vmul.f32 %v432, %v453
    %v455 = vpack.c.bf16 %v454, %v454
    %v456 = vld [vmem:[#allocation8] sm:$0xf]
    %v457 = vld [vmem:[#allocation8 + $0x4] sm:$0xf]
    %v458 = vld [vmem:[#allocation8 + $0x8] sm:$0xf]
    %v459 = vld [vmem:[#allocation8 + $0xc] sm:$0xf]
    %v460 = vld [vmem:[#allocation8 + $0x10] sm:$0xf]
    %v461 = vld [vmem:[#allocation8 + $0x14] sm:$0xf]
    %v462 = vld [vmem:[#allocation8 + $0x18] sm:$0xf]
    %v463 = vld [vmem:[#allocation8 + $0x1c] sm:$0xf]
    %v464 = vld [vmem:[#allocation8 + $0x20] sm:$0xf]
    %v465 = vld [vmem:[#allocation8 + $0x24] sm:$0xf]
    %v466 = vld [vmem:[#allocation8 + $0x28] sm:$0xf]
    %v467 = vld [vmem:[#allocation8 + $0x2c] sm:$0xf]
    %v468 = vld [vmem:[#allocation8 + $0x30] sm:$0xf]
    %v469 = vld [vmem:[#allocation8 + $0x34] sm:$0xf]
    %v470 = vld [vmem:[#allocation8 + $0x38] sm:$0xf]
    %v471 = vld [vmem:[#allocation8 + $0x3c] sm:$0xf]
    %v488 = vunpack.c.l.b16 %v456
    %v489 = vunpack.c.l.b16 %v457
    %v490 = vunpack.c.l.b16 %v458
    %v491 = vunpack.c.l.b16 %v459
    %v492 = vunpack.c.l.b16 %v460
    %v493 = vunpack.c.l.b16 %v461
    %v494 = vunpack.c.l.b16 %v462
    %v495 = vunpack.c.l.b16 %v463
    %v496 = vunpack.c.l.b16 %v464
    %v497 = vunpack.c.l.b16 %v465
    %v498 = vunpack.c.l.b16 %v466
    %v499 = vunpack.c.l.b16 %v467
    %v500 = vunpack.c.l.b16 %v468
    %v501 = vunpack.c.l.b16 %v469
    %v502 = vunpack.c.l.b16 %v470
    %v503 = vunpack.c.l.b16 %v471
    %v504 = vpack.c.b16 %v489, %v488
    %v505 = vpack.c.b16 %v491, %v490
    %v506 = vpack.c.b16 %v493, %v492
    %v507 = vpack.c.b16 %v495, %v494
    %v508 = vpack.c.b16 %v497, %v496
    %v509 = vpack.c.b16 %v499, %v498
    %v510 = vpack.c.b16 %v501, %v500
    %v511 = vpack.c.b16 %v503, %v502
    %520 = vmatpush.bf16.msra.mxu0 %v511
    %521 = vmatpush.bf16.msra.mxu0 %v510
    %522 = vmatpush.bf16.msra.mxu0 %v509
    %523 = vmatpush.bf16.msra.mxu0 %v508
    %524 = vmatpush.bf16.msra.mxu0 %v507
    %525 = vmatpush.bf16.msra.mxu0 %v506
    %526 = vmatpush.bf16.msra.mxu0 %v505
    %527 = vmatpush.bf16.msra.mxu0 %v504
    %528 = vmatmul.bf16.gmra.mxu0 %v455
    %v529 = vpop.f32.mrf.mxu0
    %v530 = vadd.f32 %v308, %v529
    %v531 = vpop.f32.mrf.mxu0
    %532 = vdwg.mxu0
    %v533 = vld [vmem:[%s10] sm:$0x1]
    %v535 = vperm.slane %v533, 0
    %v537 = vadd.f32 %v530, %v535
    %v538 = vxor.u32 %v537, 2147483648
    %v539 = vmul.f32 %v538, 1.442695
    %v540 = vpow.pop %v539
    %v541 = vadd.f32 %v540, 1.0
    %v542 = vrcp.pop %v541
    %v543 = vmul.f32 %v541, %v542
    %v544 = vsub.f32 1.0, %v543
    %v545 = vmul.f32 %v542, %v544
    %v546 = vadd.f32 %v542, %v545
    %vm547 = vweird.f32 %v541
    %vm548 = vweird.f32 %v542
    %vm549 = vmor %vm547, %vm548
    %v550 = vsel %vm549, %v542, %v546
    %v551 = vand.u32 2147483647, %v541
    %vm552 = vcmp.eq.f32.partialorder %v551, 8.507059e+37
    %v553 = vand.u32 %v541, 2147483648
    %v554 = vor.u32 1.1754944e-38, %v553
    %v555 = vsel %vm552, %v554, %v550
    %v556 = vmul.f32 1.0, %v555
    %v557 = vmul.f32 %v537, %v556
    %v558 = vpack.c.bf16 %v557, %v557
    %v559 = vld [vmem:[#allocation10] sm:$0xf]
    %v560 = vld [vmem:[#allocation10 + $0x4] sm:$0xf]
    %v561 = vld [vmem:[#allocation10 + $0x8] sm:$0xf]
    %v562 = vld [vmem:[#allocation10 + $0xc] sm:$0xf]
    %v563 = vld [vmem:[#allocation10 + $0x10] sm:$0xf]
    %v564 = vld [vmem:[#allocation10 + $0x14] sm:$0xf]
    %v565 = vld [vmem:[#allocation10 + $0x18] sm:$0xf]
    %v566 = vld [vmem:[#allocation10 + $0x1c] sm:$0xf]
    %v567 = vld [vmem:[#allocation10 + $0x20] sm:$0xf]
    %v568 = vld [vmem:[#allocation10 + $0x24] sm:$0xf]
    %v569 = vld [vmem:[#allocation10 + $0x28] sm:$0xf]
    %v570 = vld [vmem:[#allocation10 + $0x2c] sm:$0xf]
    %v571 = vld [vmem:[#allocation10 + $0x30] sm:$0xf]
    %v572 = vld [vmem:[#allocation10 + $0x34] sm:$0xf]
    %v573 = vld [vmem:[#allocation10 + $0x38] sm:$0xf]
    %v574 = vld [vmem:[#allocation10 + $0x3c] sm:$0xf]
    %v575 = vld [vmem:[%s12] sm:$0x1]
    %v577 = vperm.slane %v575, 0
    %v595 = vunpack.c.l.b16 %v559
    %v596 = vunpack.c.l.b16 %v560
    %v597 = vunpack.c.l.b16 %v561
    %v598 = vunpack.c.l.b16 %v562
    %v599 = vunpack.c.l.b16 %v563
    %v600 = vunpack.c.l.b16 %v564
    %v601 = vunpack.c.l.b16 %v565
    %v602 = vunpack.c.l.b16 %v566
    %v603 = vunpack.c.l.b16 %v567
    %v604 = vunpack.c.l.b16 %v568
    %v605 = vunpack.c.l.b16 %v569
    %v606 = vunpack.c.l.b16 %v570
    %v607 = vunpack.c.l.b16 %v571
    %v608 = vunpack.c.l.b16 %v572
    %v609 = vunpack.c.l.b16 %v573
    %v610 = vunpack.c.l.b16 %v574
    %v611 = vpack.c.b16 %v596, %v595
    %v612 = vpack.c.b16 %v598, %v597
    %v613 = vpack.c.b16 %v600, %v599
    %v614 = vpack.c.b16 %v602, %v601
    %v615 = vpack.c.b16 %v604, %v603
    %v616 = vpack.c.b16 %v606, %v605
    %v617 = vpack.c.b16 %v608, %v607
    %v618 = vpack.c.b16 %v610, %v609
    %627 = vmatpush.bf16.msra.mxu0 %v618
    %628 = vmatpush.bf16.msra.mxu0 %v617
    %629 = vmatpush.bf16.msra.mxu0 %v616
    %630 = vmatpush.bf16.msra.mxu0 %v615
    %631 = vmatpush.bf16.msra.mxu0 %v614
    %632 = vmatpush.bf16.msra.mxu0 %v613
    %633 = vmatpush.bf16.msra.mxu0 %v612
    %634 = vmatpush.bf16.msra.mxu0 %v611
    %635 = vmatmul.bf16.gmra.mxu0 %v558
    %v636 = vpop.f32.mrf.mxu0
    %v637 = vadd.f32 %v577, %v636
    %v638 = vpop.f32.mrf.mxu0
    %639 = vdwg.mxu0
    %v640 = vxor.u32 %v637, 2147483648
    %v641 = vmul.f32 %v640, 1.442695
    %v642 = vpow.pop %v641
    %v643 = vadd.f32 %v642, 1.0
    %v644 = vrcp.pop %v643
    %v645 = vmul.f32 %v643, %v644
    %v646 = vsub.f32 1.0, %v645
    %v647 = vmul.f32 %v644, %v646
    %v648 = vadd.f32 %v644, %v647
    %vm649 = vweird.f32 %v643
    %vm650 = vweird.f32 %v644
    %vm651 = vmor %vm649, %vm650
    %v652 = vsel %vm651, %v644, %v648
    %v653 = vand.u32 2147483647, %v643
    %vm654 = vcmp.eq.f32.partialorder %v653, 8.507059e+37
    %v655 = vand.u32 %v643, 2147483648
    %v656 = vor.u32 1.1754944e-38, %v655
    %v657 = vsel %vm654, %v656, %v652
    %v658 = vmul.f32 1.0, %v657
    %v659 = vmul.f32 %v637, %v658
    %v660 = vld [vmem:[%s13] sm:$0x1]
    %v662 = vperm.slane %v660, 0
    %v664 = vmul.f32 %v659, %v662
    %665 = vadd.xlane.f32.xlu0 %v664
    %v666 = vpop.xlane.xlu0 %665
    %v667 = vld [vmem:[#allocation2] sm:$0x1]
    %v669 = vperm.slane %v667, 0
    %v671 = vadd.f32 %v666, %v669
    %vm672 = vcmask 7168
    %673 = vst.msk [vmem:[%s15] sm:$0xff] %vm672, %v671
    // Predicated region
    $region82: #{tpu_custom_call.1} parent=1 // pred_check
      _
    $region83: #{tpu_custom_call.1} parent=1 // pred_check_branch
      %675 = sbr.rel (0) target = $region85
    $region84: #{tpu_custom_call.1} parent=1 // pred_region
      _
    $region85: #{tpu_custom_call.1} parent=1 // pred_fallthru
      _
    // Predicated region
    $region86: #{tpu_custom_call.1} parent=1 // pred_check
      _
    $region87: #{tpu_custom_call.1} parent=1 // pred_check_branch
      %677 = sbr.rel (0) target = $region89
    $region88: #{tpu_custom_call.1} parent=1 // pred_region
      _
    $region89: #{tpu_custom_call.1} parent=1 // pred_fallthru
      _
    %678 = vsyncpa [#allocation4], 1
    %679 = vsyncpa [#allocation6], 1
    %680 = vsyncpa [#allocation9], 1

</llo_original>
